<compile_context>
chip_gen: v5e
topology: v5e:2x2
jax: 0.10.0
libtpu: 0.0.40
codegen_flags: <defaults>
</compile_context>

<pallas_src>
import functools

import jax
import jax.numpy as jnp
from jax.experimental import pallas as pl
from jax.experimental.pallas import tpu as pltpu

_LANE = 128
_SUBLANE = 8
# Only split the batch into multiple grid steps when total streamed activation
# bytes exceed this (each grid step costs ~0.35us of fixed overhead).
_SPLIT_BYTES_THRESHOLD = 1 << 20


def _round_up(x, m):
    return (x + m - 1) // m * m


def _pad2d(a, rows, cols):
    r, c = a.shape
    if r == rows and c == cols:
        return a
    return jnp.pad(a, ((0, rows - r), (0, cols - c)))


def _vmem_budget_bytes():
    """Chip-aware VMEM request ceiling, leaving headroom for Mosaic scratch."""
    try:
        cap = int(pltpu.get_tpu_info().vmem_capacity_bytes)
    except Exception:  # narrow: hardware query only; conservative fallback
        cap = 64 << 20
    if cap >= (96 << 20):
        # v5e / v6e: 128 MiB physical -> allow up to ~104 MiB.
        return min(cap - (24 << 20), 104 << 20)
    # v7x: 64 MiB physical per TC -> cap at ~48 MiB to keep compiler headroom.
    return max(32 << 20, cap - (16 << 20))


@functools.lru_cache(maxsize=None)
def _single_buffered_params_supported():
    """Explicit capability probe for pipeline_mode=pl.Buffered(1) on TPU.

    Runs a tiny pallas_call once; replaces the previous blanket try/except
    around the whole forward (which could mask real failures)."""
    try:
        def _k(x_ref, w_ref, o_ref):
            o_ref[...] = x_ref[...] + w_ref[...]

        fn = pl.pallas_call(
            _k,
            out_shape=jax.ShapeDtypeStruct((16, 128), jnp.float32),
            grid_spec=pltpu.PrefetchScalarGridSpec(
                num_scalar_prefetch=0,
                grid=(2,),
                in_specs=[
                    pl.BlockSpec((8, 128), lambda i: (i, 0)),
                    pl.BlockSpec((8, 128), lambda i: (0, 0),
                                 pipeline_mode=pl.Buffered(1)),
                ],
                out_specs=pl.BlockSpec((8, 128), lambda i: (i, 0)),
            ),
        )
        x = jnp.zeros((16, 128), jnp.float32)
        w = jnp.zeros((8, 128), jnp.float32)
        jax.block_until_ready(fn(x, w))
        return True
    except Exception:  # capability probe only
        return False


def _pick_batch_tile(batch, bytes_per_row, target=512):
    """Multiple-of-8 batch tile with core-count-aware step count."""
    b8 = _round_up(max(int(batch), 1), _SUBLANE)
    tile = min(_round_up(target, _SUBLANE), b8)
    if b8 * bytes_per_row < _SPLIT_BYTES_THRESHOLD:
        # Tiny activation traffic (weights are grid-invariant, only x/out
        # stream): per-step overhead dominates, so use as few steps as
        # possible (one step when the batch fits the target tile).
        return tile
    # Enough streamed bytes to hide behind compute: aim for >= 4 grid steps,
    # i.e. >= 2 steps per TensorCore when the "parallel" axis is split across
    # v7x's 2 TCs, so the x-in / out-writeback DMAs pipeline on every core.
    min_steps = 4
    if b8 // tile < min_steps and b8 >= min_steps * _SUBLANE:
        tile = _round_up(pl.cdiv(b8, min_steps), _SUBLANE)
    return tile


def _deepnet_kernel(*refs, num_mid, compute_dtype):
    """refs = (x, w_first, [w_mid_stack], w_last, b_all, out)."""
    if num_mid > 0:
        x_ref, w_first_ref, w_mid_ref, w_last_ref, b_ref, out_ref = refs
    else:
        x_ref, w_first_ref, w_last_ref, b_ref, out_ref = refs
        w_mid_ref = None

    hidden_pad = w_first_ref.shape[1]
    out_pad = w_last_ref.shape[1]

    h = x_ref[...]
    if h.dtype != compute_dtype:
        h = h.astype(compute_dtype)

    # Layer 0: input -> hidden, ReLU.  MXU in compute_dtype, f32 accumulation,
    # f32 bias already resident (no per-layer cast).
    acc = jnp.dot(h, w_first_ref[...], preferred_element_type=jnp.float32)
    acc = acc + b_ref[0:1, :hidden_pad]
    h = jnp.maximum(acc, 0.0).astype(compute_dtype)

    # Hidden layers: hidden -> hidden, ReLU.  fori_loop over the stacked
    # (num_mid, H, H) slab bounds the live f32 working set regardless of
    # depth (a fully unrolled python loop keeps every layer's temps live).
    if num_mid > 0:
        def _layer(l, h):
            acc = jnp.dot(h, w_mid_ref[l], preferred_element_type=jnp.float32)
            b = b_ref[pl.ds(l + 1, 1), :][:, :hidden_pad]
            return jnp.maximum(acc + b, 0.0).astype(compute_dtype)

        h = jax.lax.fori_loop(0, num_mid, _layer, h,
                              unroll=bool(num_mid <= 4))

    # Final layer: hidden -> output (no ReLU).
    acc = jnp.dot(h, w_last_ref[...], preferred_element_type=jnp.float32)
    acc = acc + b_ref[num_mid + 1:num_mid + 2, :out_pad]
    out_ref[...] = acc.astype(out_ref.dtype)


def deepnet_forward(x, weights, biases, *, compute_dtype=jnp.bfloat16,
                    out_dtype=None, batch_tile=None):
    """Fused DeepNet forward.

    x: (B, input_size); weights[i]: (in_i, out_i) (== PyTorch W.T);
    biases[i]: (out_i,).  Structure must match DeepNet: in->H, (H->H)*, H->out.
    """
    num_linear = len(weights)
    if num_linear < 2:
        raise ValueError("DeepNet has at least two Linear layers")
    B, in_features = x.shape
    hidden = weights[0].shape[1]
    out_features = weights[-1].shape[1]
    num_mid = num_linear - 2
    if weights[0].shape[0] != in_features or weights[-1].shape[0] != hidden:
        raise ValueError("weight shapes do not match the DeepNet structure")
    for w in weights[1:-1]:
        if w.shape != (hidden, hidden):
            raise ValueError("hidden-layer weights must all be (H, H)")

    compute_dtype = jnp.dtype(compute_dtype)
    out_dtype = jnp.dtype(out_dtype) if out_dtype is not None else jnp.dtype(x.dtype)

    # Lane-pad every feature dim to a multiple of 128 (lane-dense, unmasked
    # stores and 128-aligned MXU tiles); padding is sliced off at the end.
    in_pad = _round_up(in_features, _LANE)
    hidden_pad = _round_up(hidden, _LANE)
    out_pad = _round_up(out_features, _LANE)
    max_pad = max(hidden_pad, out_pad)

    # MXU operands in compute_dtype (bf16 by default); biases consolidated
    # into a single f32 (num_linear, max_pad) array.
    w_first = _pad2d(weights[0], in_pad, hidden_pad).astype(compute_dtype)
    w_last = _pad2d(weights[-1], hidden_pad, out_pad).astype(compute_dtype)
    if num_mid > 0:
        w_mid = jnp.stack(
            [_pad2d(w, hidden_pad, hidden_pad) for w in weights[1:-1]]
        ).astype(compute_dtype)
    b_all = jnp.stack(
        [_pad2d(b.reshape(1, -1).astype(jnp.float32), 1, max_pad)[0]
         for b in biases]
    )

    compute_isize = compute_dtype.itemsize
    out_isize = out_dtype.itemsize
    bytes_per_row = in_pad * compute_isize + out_pad * out_isize
    if batch_tile is None:
        batch_tile = _pick_batch_tile(B, bytes_per_row)
    batch_tile = max(_SUBLANE, _round_up(int(batch_tile), _SUBLANE))
    b_pad = _round_up(B, batch_tile)
    grid = (b_pad // batch_tile,)

    x_p = _pad2d(x.astype(compute_dtype), b_pad, in_pad)

    params = [w_first] + ([w_mid] if num_mid > 0 else []) + [w_last, b_all]

    single_buffer = _single_buffered_params_supported()
    param_kwargs = {"pipeline_mode": pl.Buffered(1)} if single_buffer else {}

    in_specs = [pl.BlockSpec((batch_tile, in_pad), lambda i: (i, 0))]
    for p in params:
        in_specs.append(
            pl.BlockSpec(p.shape, lambda i, _n=p.ndim: (0,) * _n,
                         **param_kwargs))
    out_spec = pl.BlockSpec((batch_tile, out_pad), lambda i: (i, 0))

    # Explicit, chip-aware VMEM budget + hard fit check.
    param_bytes = sum(int(p.size) * p.dtype.itemsize for p in params)
    param_bufs = 1 if single_buffer else 2
    io_bytes = 2 * batch_tile * bytes_per_row            # double-buffered x/out
    live_bytes = (batch_tile * hidden_pad * compute_isize          # h carry
                  + 2 * batch_tile * max(in_pad, max_pad) * 4)     # f32 temps
    vmem_needed = param_bufs * param_bytes + io_bytes + live_bytes
    vmem_budget = _vmem_budget_bytes()
    if vmem_needed > vmem_budget:
        # TODO(synk): stream the stacked hidden weights through a second grid
        # axis (layer/K tiling with a VMEM f32 accumulator) instead of keeping
        # everything resident; until then fail loudly rather than spill.
        raise NotImplementedError(
            f"DeepNet params + working set ({vmem_needed} B) exceed the VMEM "
            f"budget ({vmem_budget} B) on this chip")
    vmem_limit = int(min(vmem_budget, max(32 << 20, vmem_needed + (8 << 20))))

    flops = 2 * b_pad * (in_pad * hidden_pad
                         + num_mid * hidden_pad * hidden_pad
                         + hidden_pad * out_pad)
    bytes_accessed = (int(x_p.size) * compute_isize + param_bytes
                      + b_pad * out_pad * out_isize)
    cost = pl.CostEstimate(flops=flops, transcendentals=0,
                           bytes_accessed=bytes_accessed)

    kernel = functools.partial(_deepnet_kernel, num_mid=num_mid,
                               compute_dtype=compute_dtype)

    out_p = pl.pallas_call(
        kernel,
        out_shape=jax.ShapeDtypeStruct((b_pad, out_pad), out_dtype),
        grid_spec=pltpu.PrefetchScalarGridSpec(
            num_scalar_prefetch=0,
            grid=grid,
            in_specs=in_specs,
            out_specs=out_spec,
        ),
        compiler_params=pltpu.CompilerParams(
            dimension_semantics=("parallel",),
            vmem_limit_bytes=vmem_limit,
        ),
        cost_estimate=cost,
    )(x_p, *params)

    return out_p[:B, :out_features]


def init_deepnet_params(key, input_size, hidden_size, num_layers,
                        dtype=jnp.float32):
    """Deterministic init mirroring the nn.Linear shapes of DeepNet."""
    dims = [input_size] + [hidden_size] * (num_layers - 1) + [input_size]
    weights, biases = [], []
    for i in range(len(dims) - 1):
        fan_in, fan_out = dims[i], dims[i + 1]
        key, kw, kb = jax.random.split(key, 3)
        bound = 1.0 / jnp.sqrt(jnp.asarray(fan_in, jnp.float32))
        w = jax.random.uniform(kw, (fan_in, fan_out), dtype,
                               minval=-bound, maxval=bound)
        b = jax.random.uniform(kb, (fan_out,), dtype,
                               minval=-bound, maxval=bound)
        weights.append(w)
        biases.append(b)
    return weights, biases


def deepnet_ref(x, weights, biases):
    """Pure-JAX reference (full-precision matmuls) for correctness checks."""
    h = x
    for i, (w, b) in enumerate(zip(weights, biases)):
        h = jnp.dot(h, w, precision=jax.lax.Precision.HIGHEST) + b
        if i != len(weights) - 1:
            h = jnp.maximum(h, 0.0)
    return h


if __name__ == "__main__":
    input_size = 4
    hidden_size = 32
    num_layers = 4    # Linear(4,32), Linear(32,32), Linear(32,32), Linear(32,4)
    batch = 256

    key = jax.random.PRNGKey(0)
    key, kx = jax.random.split(key)
    x = jax.random.normal(kx, (batch, input_size), jnp.float32)
    weights, biases = init_deepnet_params(key, input_size, hidden_size,
                                          num_layers)

    ref = deepnet_ref(x, weights, biases)

    # f32 MXU path: tight agreement with the f32 PyTorch-style reference.
    out_f32 = jax.block_until_ready(
        deepnet_forward(x, weights, biases, compute_dtype=jnp.float32))
    assert out_f32.shape == (batch, input_size)
    err_f32 = float(jnp.max(jnp.abs(out_f32 - ref)))
    assert jnp.allclose(out_f32, ref, atol=1e-4, rtol=1e-4), \
        f"f32 path max abs err {err_f32}"

    # Default bf16 MXU path (f32 accumulation): looser tolerance vs f32 ref.
    out_bf16 = jax.block_until_ready(deepnet_forward(x, weights, biases))
    err_bf16 = float(jnp.max(jnp.abs(out_bf16 - ref)))
    assert jnp.allclose(out_bf16, ref, atol=5e-2, rtol=5e-2), \
        f"bf16 path max abs err {err_bf16}"

    # Multi-step batch-tiled grid path (exercises tiling / pipelining);
    # batch rows are independent so results match the single-step run.
    out_tiled = jax.block_until_ready(
        deepnet_forward(x, weights, biases, batch_tile=64))
    assert jnp.allclose(out_tiled, out_bf16, atol=1e-6, rtol=1e-6)

    print("KERNEL_OK")
</pallas_src>

<mosaic_0001>
module attributes {stable_mosaic.version = 11 : i64} {
  func.func @_k(%arg0: i32, %arg1: memref<8x128xf32, #tpu.memory_space<vmem>>, %arg2: memref<8x128xf32, #tpu.memory_space<vmem>>, %arg3: memref<8x128xf32, #tpu.memory_space<vmem>>) attributes {dimension_semantics = [#tpu.dimension_semantics<arbitrary>], iteration_bounds = array<i64: 2>, scalar_prefetch = 0 : i64, scratch_operands = 0 : i64, tpu.core_type = #tpu.core_type<tc>, window_params = [{transform_indices = @transform_0, window_bounds = array<i64: 8, 128>}, {pipeline_mode = #tpu.pipeline_mode<synchronous>, transform_indices = @transform_1, window_bounds = array<i64: 8, 128>}, {transform_indices = @transform_2, window_bounds = array<i64: 8, 128>}]} {
    %c0 = arith.constant 0 : index
    %c0_0 = arith.constant 0 : index
    %0 = vector.load %arg1[%c0, %c0_0] : memref<8x128xf32, #tpu.memory_space<vmem>>, vector<8x128xf32>
    %c0_1 = arith.constant 0 : index
    %c0_2 = arith.constant 0 : index
    %1 = vector.load %arg2[%c0_1, %c0_2] : memref<8x128xf32, #tpu.memory_space<vmem>>, vector<8x128xf32>
    %2 = arith.addf %0, %1 : vector<8x128xf32>
    %c0_3 = arith.constant 0 : index
    %c0_4 = arith.constant 0 : index
    %3 = vector.load %arg3[%c0_3, %c0_4] : memref<8x128xf32, #tpu.memory_space<vmem>>, vector<8x128xf32>
    tpu.vector_store %arg3[%c0_3, %c0_4], %2 {strides = array<i32>} : memref<8x128xf32, #tpu.memory_space<vmem>>, vector<8x128xf32>,
    return
  }
  func.func @transform_0(%arg0: i32) -> (i32, i32) {
    %c0_i32 = arith.constant 0 : i32
    %c0_i32_0 = arith.constant 0 : i32
    return %arg0, %c0_i32 : i32, i32
  }
  func.func @transform_1(%arg0: i32) -> (i32, i32) {
    %c0_i32 = arith.constant 0 : i32
    %c0_i32_0 = arith.constant 0 : i32
    %c0_i32_1 = arith.constant 0 : i32
    return %c0_i32, %c0_i32_0 : i32, i32
  }
  func.func @transform_2(%arg0: i32) -> (i32, i32) {
    %c0_i32 = arith.constant 0 : i32
    %c0_i32_0 = arith.constant 0 : i32
    return %arg0, %c0_i32 : i32, i32
  }
}

module attributes {stable_mosaic.version = 11 : i64} {
  func.func @_deepnet_kernel(%arg0: i32, %arg1: memref<256x128xf32, #tpu.memory_space<vmem>>, %arg2: memref<128x128xf32, #tpu.memory_space<vmem>>, %arg3: memref<2x128x128xf32, #tpu.memory_space<vmem>>, %arg4: memref<128x128xf32, #tpu.memory_space<vmem>>, %arg5: memref<4x128xf32, #tpu.memory_space<vmem>>, %arg6: memref<256x128xf32, #tpu.memory_space<vmem>>) attributes {dimension_semantics = [#tpu.dimension_semantics<parallel>], iteration_bounds = array<i64: 1>, scalar_prefetch = 0 : i64, scratch_operands = 0 : i64, tpu.core_type = #tpu.core_type<tc>, window_params = [{transform_indices = @transform_0, window_bounds = array<i64: 256, 128>}, {pipeline_mode = #tpu.pipeline_mode<synchronous>, transform_indices = @transform_1, window_bounds = array<i64: 128, 128>}, {pipeline_mode = #tpu.pipeline_mode<synchronous>, transform_indices = @transform_2, window_bounds = array<i64: 2, 128, 128>}, {pipeline_mode = #tpu.pipeline_mode<synchronous>, transform_indices = @transform_3, window_bounds = array<i64: 128, 128>}, {pipeline_mode = #tpu.pipeline_mode<synchronous>, transform_indices = @transform_4, window_bounds = array<i64: 4, 128>}, {transform_indices = @transform_5, window_bounds = array<i64: 256, 128>}]} {
    %c0 = arith.constant 0 : index
    %c0_0 = arith.constant 0 : index
    %0 = vector.load %arg1[%c0, %c0_0] : memref<256x128xf32, #tpu.memory_space<vmem>>, vector<256x128xf32>
    %c0_1 = arith.constant 0 : index
    %c0_2 = arith.constant 0 : index
    %1 = vector.load %arg2[%c0_1, %c0_2] : memref<128x128xf32, #tpu.memory_space<vmem>>, vector<128x128xf32>
    %cst = arith.constant dense<0.000000e+00> : vector<256x128xf32>
    %2 = tpu.matmul %0, %1, %cst {dimension_numbers = #tpu.dot_dimension_numbers<[1], [0], [0], [1], [0, 0, 1, 1], [], []>} : vector<256x128xf32>, vector<128x128xf32>, vector<256x128xf32> -> vector<256x128xf32>
    %c0_3 = arith.constant 0 : index
    %c0_4 = arith.constant 0 : index
    %3 = vector.load %arg5[%c0_3, %c0_4] : memref<4x128xf32, #tpu.memory_space<vmem>>, vector<1x128xf32>
    %4 = vector.broadcast %3 : vector<1x128xf32> to vector<256x128xf32>
    %5 = arith.addf %2, %4 : vector<256x128xf32>
    %cst_5 = arith.constant 0.000000e+00 : f32
    %6 = vector.broadcast %cst_5 : f32 to vector<256x128xf32>
    %7 = arith.maximumf %5, %6 : vector<256x128xf32>
    %c0_i32 = arith.constant 0 : i32
    %8 = arith.index_cast %c0_i32 : i32 to index
    %c0_6 = arith.constant 0 : index
    %c0_7 = arith.constant 0 : index
    %9 = vector.load %arg3[%8, %c0_6, %c0_7] : memref<2x128x128xf32, #tpu.memory_space<vmem>>, vector<1x128x128xf32>
    %10 = vector.shape_cast %9 : vector<1x128x128xf32> to vector<128x128xf32>
    %cst_8 = arith.constant dense<0.000000e+00> : vector<256x128xf32>
    %11 = tpu.matmul %7, %10, %cst_8 {dimension_numbers = #tpu.dot_dimension_numbers<[1], [0], [0], [1], [0, 0, 1, 1], [], []>} : vector<256x128xf32>, vector<128x128xf32>, vector<256x128xf32> -> vector<256x128xf32>
    %c1_i32 = arith.constant 1 : i32
    %12 = arith.addi %c0_i32, %c1_i32 : i32
    %13 = arith.index_cast %12 : i32 to index
    %c0_9 = arith.constant 0 : index
    %14 = vector.load %arg5[%13, %c0_9] : memref<4x128xf32, #tpu.memory_space<vmem>>, vector<1x128xf32>
    %15 = vector.broadcast %14 : vector<1x128xf32> to vector<256x128xf32>
    %16 = arith.addf %11, %15 : vector<256x128xf32>
    %cst_10 = arith.constant 0.000000e+00 : f32
    %17 = vector.broadcast %cst_10 : f32 to vector<256x128xf32>
    %18 = arith.maximumf %16, %17 : vector<256x128xf32>
    %c1_i32_11 = arith.constant 1 : i32
    %19 = arith.index_cast %c1_i32_11 : i32 to index
    %c0_12 = arith.constant 0 : index
    %c0_13 = arith.constant 0 : index
    %20 = vector.load %arg3[%19, %c0_12, %c0_13] : memref<2x128x128xf32, #tpu.memory_space<vmem>>, vector<1x128x128xf32>
    %21 = vector.shape_cast %20 : vector<1x128x128xf32> to vector<128x128xf32>
    %cst_14 = arith.constant dense<0.000000e+00> : vector<256x128xf32>
    %22 = tpu.matmul %18, %21, %cst_14 {dimension_numbers = #tpu.dot_dimension_numbers<[1], [0], [0], [1], [0, 0, 1, 1], [], []>} : vector<256x128xf32>, vector<128x128xf32>, vector<256x128xf32> -> vector<256x128xf32>
    %c1_i32_15 = arith.constant 1 : i32
    %23 = arith.addi %c1_i32_11, %c1_i32_15 : i32
    %24 = arith.index_cast %23 : i32 to index
    %c0_16 = arith.constant 0 : index
    %25 = vector.load %arg5[%24, %c0_16] : memref<4x128xf32, #tpu.memory_space<vmem>>, vector<1x128xf32>
    %26 = vector.broadcast %25 : vector<1x128xf32> to vector<256x128xf32>
    %27 = arith.addf %22, %26 : vector<256x128xf32>
    %cst_17 = arith.constant 0.000000e+00 : f32
    %28 = vector.broadcast %cst_17 : f32 to vector<256x128xf32>
    %29 = arith.maximumf %27, %28 : vector<256x128xf32>
    %c2_i32 = arith.constant 2 : i32
    %c0_18 = arith.constant 0 : index
    %c0_19 = arith.constant 0 : index
    %30 = vector.load %arg4[%c0_18, %c0_19] : memref<128x128xf32, #tpu.memory_space<vmem>>, vector<128x128xf32>
    %cst_20 = arith.constant dense<0.000000e+00> : vector<256x128xf32>
    %31 = tpu.matmul %29, %30, %cst_20 {dimension_numbers = #tpu.dot_dimension_numbers<[1], [0], [0], [1], [0, 0, 1, 1], [], []>} : vector<256x128xf32>, vector<128x128xf32>, vector<256x128xf32> -> vector<256x128xf32>
    %c3 = arith.constant 3 : index
    %c0_21 = arith.constant 0 : index
    %32 = vector.load %arg5[%c3, %c0_21] : memref<4x128xf32, #tpu.memory_space<vmem>>, vector<1x128xf32>
    %33 = vector.broadcast %32 : vector<1x128xf32> to vector<256x128xf32>
    %34 = arith.addf %31, %33 : vector<256x128xf32>
    %c0_22 = arith.constant 0 : index
    %c0_23 = arith.constant 0 : index
    %35 = vector.load %arg6[%c0_22, %c0_23] : memref<256x128xf32, #tpu.memory_space<vmem>>, vector<256x128xf32>
    tpu.vector_store %arg6[%c0_22, %c0_23], %34 {strides = array<i32>} : memref<256x128xf32, #tpu.memory_space<vmem>>, vector<256x128xf32>,
    return
  }
  func.func @transform_0(%arg0: i32) -> (i32, i32) {
    %c0_i32 = arith.constant 0 : i32
    %c0_i32_0 = arith.constant 0 : i32
    return %arg0, %c0_i32 : i32, i32
  }
  func.func @transform_1(%arg0: i32) -> (i32, i32) {
    %c0_i32 = arith.constant 0 : i32
    %c0_i32_0 = arith.constant 0 : i32
    %c0_i32_1 = arith.constant 0 : i32
    return %c0_i32, %c0_i32_0 : i32, i32
  }
  func.func @transform_2(%arg0: i32) -> (i32, i32, i32) {
    %c0_i32 = arith.constant 0 : i32
    %c0_i32_0 = arith.constant 0 : i32
    %c0_i32_1 = arith.constant 0 : i32
    %c0_i32_2 = arith.constant 0 : i32
    return %c0_i32, %c0_i32_0, %c0_i32_1 : i32, i32, i32
  }
  func.func @transform_3(%arg0: i32) -> (i32, i32) {
    %c0_i32 = arith.constant 0 : i32
    %c0_i32_0 = arith.constant 0 : i32
    %c0_i32_1 = arith.constant 0 : i32
    return %c0_i32, %c0_i32_0 : i32, i32
  }
  func.func @transform_4(%arg0: i32) -> (i32, i32) {
    %c0_i32 = arith.constant 0 : i32
    %c0_i32_0 = arith.constant 0 : i32
    %c0_i32_1 = arith.constant 0 : i32
    return %c0_i32, %c0_i32_0 : i32, i32
  }
  func.func @transform_5(%arg0: i32) -> (i32, i32) {
    %c0_i32 = arith.constant 0 : i32
    %c0_i32_0 = arith.constant 0 : i32
    return %arg0, %c0_i32 : i32, i32
  }
}

</mosaic_0001>

<llo_original>
// kernel: tpu_custom_call.1
$region0: #{tpu_custom_call.1}
  #allocation0 [shape = 'u32[]', space=smem, size = 0x4, offset = 0x4, fixed_abs, tag = 'smem constant byte address 0x4 - core index']
  #allocation1 [shape = 'u32[72,128]{1,0:T(1,128)}', space=vmem, size = 0x9000, scoped, tag = 'internal scratch']
  %s0 = inlined_call_operand.hbm [shape: f32[16,128], index: 0, kind: input, shape index: {}]
  %s1 = inlined_call_operand.hbm [shape: f32[8,128], index: 1, kind: input, shape index: {}]
  %s2 = inlined_call_operand.hbm [shape: f32[16,128], index: 2, kind: output, shape index: {}]
  %s3 = sld [smem:[#allocation0]]
  $region49: #{tpu_custom_call.1} parent=0
    _
  %s5 = ssub.s32 1, %s3
  %s6 = scalar_select 0, %s5, %s3
  $region1: #{tpu_custom_call.1} parent=0
    #allocation2 [shape = 'u8[8192]{0}', space=vmem, size = 0x2000, scoped, tag = 'input window, operand 0']
    #allocation3 [shape = 's32[2]{0}', space=sflag, size = 0x8, scoped, tag = 'scoped memory for tpu_custom_call.1']
    #allocation4 [shape = 's32[2]{0}', space=sflag, size = 0x8, scoped, tag = 'scoped memory for tpu_custom_call.1']
    #allocation5 [shape = 'u8[4096]{0}', space=vmem, size = 0x1000, scoped, tag = 'input window, operand 1, single buffered']
    #allocation6 [shape = 's32[1]{0}', space=sflag, size = 0x4, scoped, tag = 'scoped memory for tpu_custom_call.1']
    #allocation7 [shape = 'u8[8192]{0}', space=vmem, size = 0x2000, scoped, tag = 'output window, operand 0']
    %7 = vsyncpa [#allocation3], 0
    %s8 = scalar_lea.sflag [#allocation3], 1
    %9 = vsyncpa %s8, 0
    %10 = vsyncpa [#allocation6], 0
    %11 = vsyncpa [#allocation4], 0
    %s12 = scalar_lea.sflag [#allocation4], 1
    %13 = vsyncpa %s12, 0
    loop: start=0, step=1, limit=4
    $region2: #{tpu_custom_call.1} parent=1 // loop_pre_header
      _
    $region3: #{tpu_custom_call.1} parent=1 // loop_header
      %s15 = sphi 0, %s19
      %p16 = scmp.ge.s32.totalorder %s15, 4
      %s25 = sphi 0, %s27
      %s28 = sphi 0, %s25
      %s29 = sphi 0, %s28
      %s45 = sphi 0, %s29
      %s49 = sphi 0, %s49
      %s51 = sphi 0, %s49
      %s52 = sphi 0, %s51
      %s66 = sphi 0, %s52
      %s72 = sphi 0, %s74
      %s75 = sphi 0, %s72
      %s76 = sphi 0, %s75
      %s92 = sphi 0, %s76
    $region4: #{tpu_custom_call.1} parent=1 // loop_header_branch
      %18 = sbr.rel (%p16) target = $region8
    $region5: #{tpu_custom_call.1} parent=1 // loop_body
      %s20 = ssub.s32 %s15, 1
      %s21 = ssub.s32 %s15, 2
      %s22 = sadd.s32 %s15, 1
      %s23 = ssub.s32 %s15, %s22
      %p24 = scmp.eq.s32.totalorder %s23, 0
      %s26 = sadd.s32 %s25, 1
      %s27 = scalar_select %p24, %s25, %s26
      %p30 = pneg %p24
      %p31 = scmp.eq.s32.totalorder %s15, 1
      %p32 = por %p30, %p31
      %p33 = scmp.ne.s32.totalorder %s25, %s28
      %p34 = scmp.eq.s32.totalorder %s15, 0
      %p35 = por %p33, %p34
      %p36 = scmp.ne.s32.totalorder %s25, %s28
      %p37 = scmp.eq.s32.totalorder %s20, 1
      %p38 = por %p36, %p37
      %p39 = scmp.ne.s32.totalorder %s28, %s29
      %p40 = scmp.eq.s32.totalorder %s20, 0
      %p41 = por %p39, %p40
      %p42 = scmp.ne.s32.totalorder %s28, %s29
      %p43 = scmp.eq.s32.totalorder %s21, 1
      %p44 = por %p42, %p43
      %p46 = scmp.ne.s32.totalorder %s29, %s45
      %p47 = scmp.eq.s32.totalorder %s21, 0
      %p48 = por %p46, %p47
      %s50 = sadd.s32 %s49, 1
      %p53 = scmp.eq.s32.totalorder %s15, 1
      %p54 = scmp.ne.s32.totalorder %s49, %s51
      %p55 = scmp.eq.s32.totalorder %s15, 0
      %p56 = por %p54, %p55
      %p57 = scmp.ne.s32.totalorder %s49, %s51
      %p58 = scmp.eq.s32.totalorder %s20, 1
      %p59 = por %p57, %p58
      %p60 = scmp.ne.s32.totalorder %s51, %s52
      %p61 = scmp.eq.s32.totalorder %s20, 0
      %p62 = por %p60, %p61
      %p63 = scmp.ne.s32.totalorder %s51, %s52
      %p64 = scmp.eq.s32.totalorder %s21, 1
      %p65 = por %p63, %p64
      %p67 = scmp.ne.s32.totalorder %s52, %s66
      %p68 = scmp.eq.s32.totalorder %s21, 0
      %p69 = por %p67, %p68
      %s70 = ssub.s32 %s15, %s22
      %p71 = scmp.eq.s32.totalorder %s70, 0
      %s73 = sadd.s32 %s72, 1
      %s74 = scalar_select %p71, %s72, %s73
      %p77 = pneg %p71
      %p78 = scmp.eq.s32.totalorder %s15, 1
      %p79 = por %p77, %p78
      %p80 = scmp.ne.s32.totalorder %s72, %s75
      %p81 = scmp.eq.s32.totalorder %s15, 0
      %p82 = por %p80, %p81
      %p83 = scmp.ne.s32.totalorder %s72, %s75
      %p84 = scmp.eq.s32.totalorder %s20, 1
      %p85 = por %p83, %p84
      %p86 = scmp.ne.s32.totalorder %s75, %s76
      %p87 = scmp.eq.s32.totalorder %s20, 0
      %p88 = por %p86, %p87
      %p89 = scmp.ne.s32.totalorder %s75, %s76
      %p90 = scmp.eq.s32.totalorder %s21, 1
      %p91 = por %p89, %p90
      %p93 = scmp.ne.s32.totalorder %s76, %s92
      %p94 = scmp.eq.s32.totalorder %s21, 0
      %p95 = por %p93, %p94
      %p96 = scmp.le.s32.totalorder 1, %s15
      %p97 = scmp.lt.s32.totalorder %s15, 3
      %p98 = pnand %p96, %p97
      %p99 = pneg %p98
      // Predicated region
      $region9: #{tpu_custom_call.1} parent=5 // pred_check
        _
      $region10: #{tpu_custom_call.1} parent=5 // pred_check_branch
        %101 = sbr.rel (%p98) target = $region12
      $region11: #{tpu_custom_call.1} parent=5 // pred_region
        %s102 = ssub.s32 %s15, 1
        // Predicated region
        $region13: #{tpu_custom_call.1} parent=11 // pred_check
          %p103 = pneg %p62
        $region14: #{tpu_custom_call.1} parent=11 // pred_check_branch
          %105 = sbr.rel (%p103) target = $region16
        $region15: #{tpu_custom_call.1} parent=11 // pred_region
          %107 = vsyncadd [#allocation6], 0
          %s109 = sshll.u32 %s1, 4
          %s110 = int_to_ptr.hbm [resolvable:$true] %s109
          %s111 = sshll.u32 [#allocation5], 4
          %s112 = int_to_ptr.vmem [resolvable:$true] %s111
          %114 = dma.hbm_to_vmem [thread:$0]  %s110, 128, %s112, [#allocation6]
        $region16: #{tpu_custom_call.1} parent=11 // pred_fallthru
          _
      $region12: #{tpu_custom_call.1} parent=5 // pred_fallthru
        _
      %p115 = scmp.lt.s32.totalorder %s15, 2
      // Predicated region
      $region17: #{tpu_custom_call.1} parent=5 // pred_check
        %p116 = pneg %p115
      $region18: #{tpu_custom_call.1} parent=5 // pred_check_branch
        %118 = sbr.rel (%p116) target = $region20
      $region19: #{tpu_custom_call.1} parent=5 // pred_region
        // Predicated region
        $region21: #{tpu_custom_call.1} parent=19 // pred_check
          %p119 = pneg %p35
        $region22: #{tpu_custom_call.1} parent=19 // pred_check_branch
          %121 = sbr.rel (%p119) target = $region24
        $region23: #{tpu_custom_call.1} parent=19 // pred_region
          %s122 = sand.u32 %s25, 1
          %s123 = scalar_lea.sflag [#allocation3], %s122
          %s124 = sand.u32 %s25, 1
          %s125 = smul.addr %s124, 8
          %s126 = scalar_lea.vmem [#allocation2], %s125
          %128 = vsyncadd %s123, 0
          %s129 = smul.addr %s15, 8
          %s130 = scalar_lea.hbm %s0, %s129
          %s132 = sshll.u32 %s130, 4
          %s133 = int_to_ptr.hbm [resolvable:$true] %s132
          %s134 = sshll.u32 %s126, 4
          %s135 = int_to_ptr.vmem [resolvable:$true] %s134
          %137 = dma.hbm_to_vmem [thread:$0]  %s133, 128, %s135, %s123
        $region24: #{tpu_custom_call.1} parent=19 // pred_fallthru
          _
      $region20: #{tpu_custom_call.1} parent=5 // pred_fallthru
        _
      %p138 = scmp.le.s32.totalorder 1, %s15
      %p139 = scmp.lt.s32.totalorder %s15, 3
      %p140 = pnand %p138, %p139
      %p141 = pneg %p140
      // Predicated region
      $region25: #{tpu_custom_call.1} parent=5 // pred_check
        _
      $region26: #{tpu_custom_call.1} parent=5 // pred_check_branch
        %143 = sbr.rel (%p140) target = $region28
      $region27: #{tpu_custom_call.1} parent=5 // pred_region
        %s144 = ssub.s32 %s15, 1
        %s145 = sand.u32 %s28, 1
        %s146 = scalar_lea.sflag [#allocation3], %s145
        %s147 = sand.u32 %s28, 1
        %s148 = smul.addr %s147, 8
        %s149 = scalar_lea.vmem [#allocation2], %s148
        // Predicated region
        $region29: #{tpu_custom_call.1} parent=27 // pred_check
          %p150 = pneg %p41
        $region30: #{tpu_custom_call.1} parent=27 // pred_check_branch
          %152 = sbr.rel (%p150) target = $region32
        $region31: #{tpu_custom_call.1} parent=27 // pred_region
          %154 = dma.done %s146, 128
        $region32: #{tpu_custom_call.1} parent=27 // pred_fallthru
          _
        // Predicated region
        $region33: #{tpu_custom_call.1} parent=27 // pred_check
          %p155 = pneg %p62
        $region34: #{tpu_custom_call.1} parent=27 // pred_check_branch
          %157 = sbr.rel (%p155) target = $region36
        $region35: #{tpu_custom_call.1} parent=27 // pred_region
          %159 = dma.done [#allocation6], 128
        $region36: #{tpu_custom_call.1} parent=27 // pred_fallthru
          _
        %s160 = sand.u32 %s28, 1
        %s161 = scalar_lea.sflag [#allocation3], %s160
        %s162 = sand.u32 %s28, 1
        %s163 = smul.addr %s162, 8
        %s164 = scalar_lea.vmem [#allocation2], %s163
        %p165 = pneg %p41
        %p166 = pneg %p38
        %p167 = pneg %p62
        %p168 = pneg %p59
        %p169 = pneg %p88
        %p170 = pneg %p85
        %s171 = sand.u32 %s75, 1
        %s172 = scalar_lea.sflag [#allocation4], %s171
        %s173 = sand.u32 %s75, 1
        %s174 = smul.addr %s173, 8
        %s175 = scalar_lea.vmem [#allocation7], %s174
        %v176 = vld [vmem:[%s149] sm:$0xff]
        %v177 = vld [vmem:[#allocation5] sm:$0xff]
        %v178 = vadd.f32 %v176, %v177
        %179 = vst [vmem:[%s175] sm:$0xff] %v178
        %s180 = sand.u32 %s75, 1
        %s181 = scalar_lea.sflag [#allocation4], %s180
        %s182 = sand.u32 %s75, 1
        %s183 = smul.addr %s182, 8
        %s184 = scalar_lea.vmem [#allocation7], %s183
        // Predicated region
        $region37: #{tpu_custom_call.1} parent=27 // pred_check
          %p185 = pneg %p85
        $region38: #{tpu_custom_call.1} parent=27 // pred_check_branch
          %187 = sbr.rel (%p185) target = $region40
        $region39: #{tpu_custom_call.1} parent=27 // pred_region
          %189 = vsyncadd %s181, 0
          %s190 = smul.addr %s20, 8
          %s191 = scalar_lea.hbm %s2, %s190
          %s193 = sshll.u32 %s184, 4
          %s194 = int_to_ptr.vmem [resolvable:$true] %s193
          %s195 = sshll.u32 %s191, 4
          %s196 = int_to_ptr.hbm [resolvable:$true] %s195
          %198 = dma.vmem_to_hbm [thread:$0]  %s194, 128, %s196, %s181
        $region40: #{tpu_custom_call.1} parent=27 // pred_fallthru
          _
      $region28: #{tpu_custom_call.1} parent=5 // pred_fallthru
        _
      %p199 = scmp.le.s32.totalorder 2, %s15
      // Predicated region
      $region41: #{tpu_custom_call.1} parent=5 // pred_check
        %p200 = pneg %p199
      $region42: #{tpu_custom_call.1} parent=5 // pred_check_branch
        %202 = sbr.rel (%p200) target = $region44
      $region43: #{tpu_custom_call.1} parent=5 // pred_region
        %s203 = ssub.s32 %s15, 2
        // Predicated region
        $region45: #{tpu_custom_call.1} parent=43 // pred_check
          %p204 = pneg %p91
        $region46: #{tpu_custom_call.1} parent=43 // pred_check_branch
          %206 = sbr.rel (%p204) target = $region48
        $region47: #{tpu_custom_call.1} parent=43 // pred_region
          %s207 = sand.u32 %s76, 1
          %s208 = scalar_lea.sflag [#allocation4], %s207
          %s209 = sand.u32 %s76, 1
          %s210 = smul.addr %s209, 8
          %s211 = scalar_lea.vmem [#allocation7], %s210
          %213 = dma.done %s208, 128
        $region48: #{tpu_custom_call.1} parent=43 // pred_fallthru
          _
      $region44: #{tpu_custom_call.1} parent=5 // pred_fallthru
        _
    $region6: #{tpu_custom_call.1} parent=1 // loop_footer
      %s19 = sadd.s32 1, %s15
    $region7: #{tpu_custom_call.1} parent=1 // loop_footer_branch
      %14 = sbr.rel target = $region3
    $region8: #{tpu_custom_call.1} parent=1 // loop_exit
      _
    %214 = vsyncpa [#allocation3], 1
    %s215 = scalar_lea.sflag [#allocation3], 1
    %216 = vsyncpa %s215, 1
    %217 = vsyncpa [#allocation6], 1
    %218 = vsyncpa [#allocation4], 1
    %s219 = scalar_lea.sflag [#allocation4], 1
    %220 = vsyncpa %s219, 1

// kernel: tpu_custom_call.1
$region0: #{tpu_custom_call.1}
  #allocation0 [shape = 'u32[]', space=smem, size = 0x4, offset = 0x4, fixed_abs, tag = 'smem constant byte address 0x4 - core index']
  #allocation1 [shape = 'u32[72,128]{1,0:T(1,128)}', space=vmem, size = 0x9000, scoped, tag = 'internal scratch']
  %s0 = inlined_call_operand.hbm [shape: f32[256,128], index: 0, kind: input, shape index: {}]
  %s1 = inlined_call_operand.hbm [shape: f32[128,128], index: 1, kind: input, shape index: {}]
  %s2 = inlined_call_operand.hbm [shape: f32[2,128,128], index: 2, kind: input, shape index: {}]
  %s3 = inlined_call_operand.hbm [shape: f32[128,128], index: 3, kind: input, shape index: {}]
  %s4 = inlined_call_operand.hbm [shape: f32[4,128], index: 4, kind: input, shape index: {}]
  %s5 = inlined_call_operand.hbm [shape: f32[256,128], index: 5, kind: output, shape index: {}]
  %s6 = sld [smem:[#allocation0]]
  $region50: #{tpu_custom_call.1} parent=0
    _
  %s8 = ssub.s32 1, %s6
  %s9 = scalar_select 0, %s8, %s6
  $region1: #{tpu_custom_call.1} parent=0
    #allocation2 [shape = 'u8[131072]{0}', space=vmem, size = 0x20000, scoped, tag = 'input window, operand 0, single buffered']
    #allocation3 [shape = 's32[1]{0}', space=sflag, size = 0x4, scoped, tag = 'scoped memory for tpu_custom_call.1']
    #allocation4 [shape = 's32[1]{0}', space=sflag, size = 0x4, scoped, tag = 'scoped memory for tpu_custom_call.1']
    #allocation5 [shape = 'u8[65536]{0}', space=vmem, size = 0x10000, scoped, tag = 'input window, operand 1, single buffered']
    #allocation6 [shape = 's32[1]{0}', space=sflag, size = 0x4, scoped, tag = 'scoped memory for tpu_custom_call.1']
    #allocation7 [shape = 'u8[131072]{0}', space=vmem, size = 0x20000, scoped, tag = 'input window, operand 2, single buffered']
    #allocation8 [shape = 'u8[65536]{0}', space=vmem, size = 0x10000, scoped, tag = 'input window, operand 3, single buffered']
    #allocation9 [shape = 's32[1]{0}', space=sflag, size = 0x4, scoped, tag = 'scoped memory for tpu_custom_call.1']
    #allocation10 [shape = 'u8[2048]{0}', space=vmem, size = 0x800, scoped, tag = 'input window, operand 4, single buffered']
    #allocation11 [shape = 'u8[131072]{0}', space=vmem, size = 0x20000, scoped, tag = 'output window, operand 0, single buffered']
    %10 = vsyncpa [#allocation3], 0
    %11 = vsyncpa [#allocation6], 0
    %12 = vsyncpa [#allocation9], 0
    %13 = vsyncpa [#allocation4], 0
    // Predicated region
    $region2: #{tpu_custom_call.1} parent=1 // pred_check
      _
    $region3: #{tpu_custom_call.1} parent=1 // pred_check_branch
      %15 = sbr.rel (0) target = $region5
    $region4: #{tpu_custom_call.1} parent=1 // pred_region
      %17 = vsyncadd [#allocation3], 0
      %s18 = sshll.u32 %s0, 4
      %s19 = int_to_ptr.hbm [resolvable:$true] %s18
      %s20 = sshll.u32 [#allocation2], 4
      %s21 = int_to_ptr.vmem [resolvable:$true] %s20
      %26 = dma.hbm_to_vmem [thread:$0]  %s19, 4096, %s21, [#allocation3], 128, 128, 8
    $region5: #{tpu_custom_call.1} parent=1 // pred_fallthru
      _
    // Predicated region
    $region6: #{tpu_custom_call.1} parent=1 // pred_check
      _
    $region7: #{tpu_custom_call.1} parent=1 // pred_check_branch
      %28 = sbr.rel (0) target = $region9
    $region8: #{tpu_custom_call.1} parent=1 // pred_region
      %30 = vsyncadd [#allocation6], 0
      %s31 = sshll.u32 %s1, 4
      %s32 = int_to_ptr.hbm [resolvable:$true] %s31
      %s33 = sshll.u32 [#allocation5], 4
      %s34 = int_to_ptr.vmem [resolvable:$true] %s33
      %39 = dma.hbm_to_vmem [thread:$0]  %s32, 2048, %s34, [#allocation6], 128, 128, 8
    $region9: #{tpu_custom_call.1} parent=1 // pred_fallthru
      _
    // Predicated region
    $region10: #{tpu_custom_call.1} parent=1 // pred_check
      _
    $region11: #{tpu_custom_call.1} parent=1 // pred_check_branch
      %41 = sbr.rel (0) target = $region13
    $region12: #{tpu_custom_call.1} parent=1 // pred_region
      %43 = vsyncadd [#allocation6], 0
      %s44 = sshll.u32 %s2, 4
      %s45 = int_to_ptr.hbm [resolvable:$true] %s44
      %s46 = sshll.u32 [#allocation7], 4
      %s47 = int_to_ptr.vmem [resolvable:$true] %s46
      %52 = dma.hbm_to_vmem [thread:$0]  %s45, 4096, %s47, [#allocation6], 128, 128, 8
    $region13: #{tpu_custom_call.1} parent=1 // pred_fallthru
      _
    // Predicated region
    $region14: #{tpu_custom_call.1} parent=1 // pred_check
      _
    $region15: #{tpu_custom_call.1} parent=1 // pred_check_branch
      %54 = sbr.rel (0) target = $region17
    $region16: #{tpu_custom_call.1} parent=1 // pred_region
      %56 = vsyncadd [#allocation9], 0
      %s57 = sshll.u32 %s3, 4
      %s58 = int_to_ptr.hbm [resolvable:$true] %s57
      %s59 = sshll.u32 [#allocation8], 4
      %s60 = int_to_ptr.vmem [resolvable:$true] %s59
      %65 = dma.hbm_to_vmem [thread:$0]  %s58, 2048, %s60, [#allocation9], 128, 128, 8
    $region17: #{tpu_custom_call.1} parent=1 // pred_fallthru
      _
    // Predicated region
    $region18: #{tpu_custom_call.1} parent=1 // pred_check
      _
    $region19: #{tpu_custom_call.1} parent=1 // pred_check_branch
      %67 = sbr.rel (0) target = $region21
    $region20: #{tpu_custom_call.1} parent=1 // pred_region
      %69 = vsyncadd [#allocation9], 0
      %s71 = sshll.u32 %s4, 4
      %s72 = int_to_ptr.hbm [resolvable:$true] %s71
      %s73 = sshll.u32 [#allocation10], 4
      %s74 = int_to_ptr.vmem [resolvable:$true] %s73
      %76 = dma.hbm_to_vmem [thread:$0]  %s72, 64, %s74, [#allocation9]
    $region21: #{tpu_custom_call.1} parent=1 // pred_fallthru
      _
    // Predicated region
    $region22: #{tpu_custom_call.1} parent=1 // pred_check
      _
    $region23: #{tpu_custom_call.1} parent=1 // pred_check_branch
      %78 = sbr.rel (0) target = $region25
    $region24: #{tpu_custom_call.1} parent=1 // pred_region
      %80 = dma.done [#allocation3], 4096
    $region25: #{tpu_custom_call.1} parent=1 // pred_fallthru
      _
    // Predicated region
    $region26: #{tpu_custom_call.1} parent=1 // pred_check
      _
    $region27: #{tpu_custom_call.1} parent=1 // pred_check_branch
      %82 = sbr.rel (0) target = $region29
    $region28: #{tpu_custom_call.1} parent=1 // pred_region
      %84 = dma.done [#allocation6], 2048
    $region29: #{tpu_custom_call.1} parent=1 // pred_fallthru
      _
    // Predicated region
    $region30: #{tpu_custom_call.1} parent=1 // pred_check
      _
    $region31: #{tpu_custom_call.1} parent=1 // pred_check_branch
      %86 = sbr.rel (0) target = $region33
    $region32: #{tpu_custom_call.1} parent=1 // pred_region
      %88 = dma.done [#allocation6], 4096
    $region33: #{tpu_custom_call.1} parent=1 // pred_fallthru
      _
    // Predicated region
    $region34: #{tpu_custom_call.1} parent=1 // pred_check
      _
    $region35: #{tpu_custom_call.1} parent=1 // pred_check_branch
      %90 = sbr.rel (0) target = $region37
    $region36: #{tpu_custom_call.1} parent=1 // pred_region
      %92 = dma.done [#allocation9], 2048
    $region37: #{tpu_custom_call.1} parent=1 // pred_fallthru
      _
    // Predicated region
    $region38: #{tpu_custom_call.1} parent=1 // pred_check
      _
    $region39: #{tpu_custom_call.1} parent=1 // pred_check_branch
      %94 = sbr.rel (0) target = $region41
    $region40: #{tpu_custom_call.1} parent=1 // pred_region
      %96 = dma.done [#allocation9], 64
    $region41: #{tpu_custom_call.1} parent=1 // pred_fallthru
      _
    %v97 = vld [vmem:[#allocation2] sm:$0xff]
    %v98 = vld [vmem:[#allocation2 + $0x8] sm:$0xff]
    %v99 = vld [vmem:[#allocation2 + $0x10] sm:$0xff]
    %v100 = vld [vmem:[#allocation2 + $0x18] sm:$0xff]
    %v101 = vld [vmem:[#allocation2 + $0x20] sm:$0xff]
    %v102 = vld [vmem:[#allocation2 + $0x28] sm:$0xff]
    %v103 = vld [vmem:[#allocation2 + $0x30] sm:$0xff]
    %v104 = vld [vmem:[#allocation2 + $0x38] sm:$0xff]
    %v105 = vld [vmem:[#allocation2 + $0x40] sm:$0xff]
    %v106 = vld [vmem:[#allocation2 + $0x48] sm:$0xff]
    %v107 = vld [vmem:[#allocation2 + $0x50] sm:$0xff]
    %v108 = vld [vmem:[#allocation2 + $0x58] sm:$0xff]
    %v109 = vld [vmem:[#allocation2 + $0x60] sm:$0xff]
    %v110 = vld [vmem:[#allocation2 + $0x68] sm:$0xff]
    %v111 = vld [vmem:[#allocation2 + $0x70] sm:$0xff]
    %v112 = vld [vmem:[#allocation2 + $0x78] sm:$0xff]
    %v113 = vld [vmem:[#allocation2 + $0x80] sm:$0xff]
    %v114 = vld [vmem:[#allocation2 + $0x88] sm:$0xff]
    %v115 = vld [vmem:[#allocation2 + $0x90] sm:$0xff]
    %v116 = vld [vmem:[#allocation2 + $0x98] sm:$0xff]
    %v117 = vld [vmem:[#allocation2 + $0xa0] sm:$0xff]
    %v118 = vld [vmem:[#allocation2 + $0xa8] sm:$0xff]
    %v119 = vld [vmem:[#allocation2 + $0xb0] sm:$0xff]
    %v120 = vld [vmem:[#allocation2 + $0xb8] sm:$0xff]
    %v121 = vld [vmem:[#allocation2 + $0xc0] sm:$0xff]
    %v122 = vld [vmem:[#allocation2 + $0xc8] sm:$0xff]
    %v123 = vld [vmem:[#allocation2 + $0xd0] sm:$0xff]
    %v124 = vld [vmem:[#allocation2 + $0xd8] sm:$0xff]
    %v125 = vld [vmem:[#allocation2 + $0xe0] sm:$0xff]
    %v126 = vld [vmem:[#allocation2 + $0xe8] sm:$0xff]
    %v127 = vld [vmem:[#allocation2 + $0xf0] sm:$0xff]
    %v128 = vld [vmem:[#allocation2 + $0xf8] sm:$0xff]
    %v129 = vld [vmem:[#allocation5] sm:$0xff]
    %v130 = vld [vmem:[#allocation5 + $0x8] sm:$0xff]
    %v131 = vld [vmem:[#allocation5 + $0x10] sm:$0xff]
    %v132 = vld [vmem:[#allocation5 + $0x18] sm:$0xff]
    %v133 = vld [vmem:[#allocation5 + $0x20] sm:$0xff]
    %v134 = vld [vmem:[#allocation5 + $0x28] sm:$0xff]
    %v135 = vld [vmem:[#allocation5 + $0x30] sm:$0xff]
    %v136 = vld [vmem:[#allocation5 + $0x38] sm:$0xff]
    %v137 = vld [vmem:[#allocation5 + $0x40] sm:$0xff]
    %v138 = vld [vmem:[#allocation5 + $0x48] sm:$0xff]
    %v139 = vld [vmem:[#allocation5 + $0x50] sm:$0xff]
    %v140 = vld [vmem:[#allocation5 + $0x58] sm:$0xff]
    %v141 = vld [vmem:[#allocation5 + $0x60] sm:$0xff]
    %v142 = vld [vmem:[#allocation5 + $0x68] sm:$0xff]
    %v143 = vld [vmem:[#allocation5 + $0x70] sm:$0xff]
    %v144 = vld [vmem:[#allocation5 + $0x78] sm:$0xff]
    %v145 = vld [vmem:[#allocation10] sm:$0x1]
    %v146 = vperm.slane %v145, 0
    %147 = vmatpush.msra.mxu0 %v144
    %148 = vmatpush.msra.mxu0 %v143
    %149 = vmatpush.msra.mxu0 %v142
    %150 = vmatpush.msra.mxu0 %v141
    %151 = vmatpush.msra.mxu0 %v140
    %152 = vmatpush.msra.mxu0 %v139
    %153 = vmatpush.msra.mxu0 %v138
    %154 = vmatpush.msra.mxu0 %v137
    %155 = vmatpush.msra.mxu0 %v136
    %156 = vmatpush.msra.mxu0 %v135
    %157 = vmatpush.msra.mxu0 %v134
    %158 = vmatpush.msra.mxu0 %v133
    %159 = vmatpush.msra.mxu0 %v132
    %160 = vmatpush.msra.mxu0 %v131
    %161 = vmatpush.msra.mxu0 %v130
    %162 = vmatpush.msra.mxu0 %v129
    %163 = vmatmul.f32.gmra.mxu0 %v97
    %v164 = vpop.f32.mrf.mxu0
    %v165 = vadd.f32 %v146, %v164
    %166 = vmatmul.f32.gmra.mxu0 %v98
    %v167 = vpop.f32.mrf.mxu0
    %v168 = vadd.f32 %v146, %v167
    %169 = vmatmul.f32.gmra.mxu0 %v99
    %v170 = vpop.f32.mrf.mxu0
    %v171 = vadd.f32 %v146, %v170
    %172 = vmatmul.f32.gmra.mxu0 %v100
    %v173 = vpop.f32.mrf.mxu0
    %v174 = vadd.f32 %v146, %v173
    %175 = vmatmul.f32.gmra.mxu0 %v101
    %v176 = vpop.f32.mrf.mxu0
    %v177 = vadd.f32 %v146, %v176
    %178 = vmatmul.f32.gmra.mxu0 %v102
    %v179 = vpop.f32.mrf.mxu0
    %v180 = vadd.f32 %v146, %v179
    %181 = vmatmul.f32.gmra.mxu0 %v103
    %v182 = vpop.f32.mrf.mxu0
    %v183 = vadd.f32 %v146, %v182
    %184 = vmatmul.f32.gmra.mxu0 %v104
    %v185 = vpop.f32.mrf.mxu0
    %v186 = vadd.f32 %v146, %v185
    %187 = vmatmul.f32.gmra.mxu0 %v105
    %v188 = vpop.f32.mrf.mxu0
    %v189 = vadd.f32 %v146, %v188
    %190 = vmatmul.f32.gmra.mxu0 %v106
    %v191 = vpop.f32.mrf.mxu0
    %v192 = vadd.f32 %v146, %v191
    %193 = vmatmul.f32.gmra.mxu0 %v107
    %v194 = vpop.f32.mrf.mxu0
    %v195 = vadd.f32 %v146, %v194
    %196 = vmatmul.f32.gmra.mxu0 %v108
    %v197 = vpop.f32.mrf.mxu0
    %v198 = vadd.f32 %v146, %v197
    %199 = vmatmul.f32.gmra.mxu0 %v109
    %v200 = vpop.f32.mrf.mxu0
    %v201 = vadd.f32 %v146, %v200
    %202 = vmatmul.f32.gmra.mxu0 %v110
    %v203 = vpop.f32.mrf.mxu0
    %v204 = vadd.f32 %v146, %v203
    %205 = vmatmul.f32.gmra.mxu0 %v111
    %v206 = vpop.f32.mrf.mxu0
    %v207 = vadd.f32 %v146, %v206
    %208 = vmatmul.f32.gmra.mxu0 %v112
    %v209 = vpop.f32.mrf.mxu0
    %v210 = vadd.f32 %v146, %v209
    %211 = vmatmul.f32.gmra.mxu0 %v113
    %v212 = vpop.f32.mrf.mxu0
    %v213 = vadd.f32 %v146, %v212
    %214 = vmatmul.f32.gmra.mxu0 %v114
    %v215 = vpop.f32.mrf.mxu0
    %v216 = vadd.f32 %v146, %v215
    %217 = vmatmul.f32.gmra.mxu0 %v115
    %v218 = vpop.f32.mrf.mxu0
    %v219 = vadd.f32 %v146, %v218
    %220 = vmatmul.f32.gmra.mxu0 %v116
    %v221 = vpop.f32.mrf.mxu0
    %v222 = vadd.f32 %v146, %v221
    %223 = vmatmul.f32.gmra.mxu0 %v117
    %v224 = vpop.f32.mrf.mxu0
    %v225 = vadd.f32 %v146, %v224
    %226 = vmatmul.f32.gmra.mxu0 %v118
    %v227 = vpop.f32.mrf.mxu0
    %v228 = vadd.f32 %v146, %v227
    %229 = vmatmul.f32.gmra.mxu0 %v119
    %v230 = vpop.f32.mrf.mxu0
    %v231 = vadd.f32 %v146, %v230
    %232 = vmatmul.f32.gmra.mxu0 %v120
    %v233 = vpop.f32.mrf.mxu0
    %v234 = vadd.f32 %v146, %v233
    %235 = vmatmul.f32.gmra.mxu0 %v121
    %v236 = vpop.f32.mrf.mxu0
    %v237 = vadd.f32 %v146, %v236
    %238 = vmatmul.f32.gmra.mxu0 %v122
    %v239 = vpop.f32.mrf.mxu0
    %v240 = vadd.f32 %v146, %v239
    %241 = vmatmul.f32.gmra.mxu0 %v123
    %v242 = vpop.f32.mrf.mxu0
    %v243 = vadd.f32 %v146, %v242
    %244 = vmatmul.f32.gmra.mxu0 %v124
    %v245 = vpop.f32.mrf.mxu0
    %v246 = vadd.f32 %v146, %v245
    %247 = vmatmul.f32.gmra.mxu0 %v125
    %v248 = vpop.f32.mrf.mxu0
    %v249 = vadd.f32 %v146, %v248
    %250 = vmatmul.f32.gmra.mxu0 %v126
    %v251 = vpop.f32.mrf.mxu0
    %v252 = vadd.f32 %v146, %v251
    %253 = vmatmul.f32.gmra.mxu0 %v127
    %v254 = vpop.f32.mrf.mxu0
    %v255 = vadd.f32 %v146, %v254
    %256 = vmatmul.f32.gmra.mxu0 %v128
    %v257 = vpop.f32.mrf.mxu0
    %v258 = vadd.f32 %v146, %v257
    %259 = vdwg.mxu0
    %v260 = vmax.f32 %v165, 0.0
    %v261 = vmax.f32 %v168, 0.0
    %v262 = vmax.f32 %v171, 0.0
    %v263 = vmax.f32 %v174, 0.0
    %v264 = vmax.f32 %v177, 0.0
    %v265 = vmax.f32 %v180, 0.0
    %v266 = vmax.f32 %v183, 0.0
    %v267 = vmax.f32 %v186, 0.0
    %v268 = vmax.f32 %v189, 0.0
    %v269 = vmax.f32 %v192, 0.0
    %v270 = vmax.f32 %v195, 0.0
    %v271 = vmax.f32 %v198, 0.0
    %v272 = vmax.f32 %v201, 0.0
    %v273 = vmax.f32 %v204, 0.0
    %v274 = vmax.f32 %v207, 0.0
    %v275 = vmax.f32 %v210, 0.0
    %v276 = vmax.f32 %v213, 0.0
    %v277 = vmax.f32 %v216, 0.0
    %v278 = vmax.f32 %v219, 0.0
    %v279 = vmax.f32 %v222, 0.0
    %v280 = vmax.f32 %v225, 0.0
    %v281 = vmax.f32 %v228, 0.0
    %v282 = vmax.f32 %v231, 0.0
    %v283 = vmax.f32 %v234, 0.0
    %v284 = vmax.f32 %v237, 0.0
    %v285 = vmax.f32 %v240, 0.0
    %v286 = vmax.f32 %v243, 0.0
    %v287 = vmax.f32 %v246, 0.0
    %v288 = vmax.f32 %v249, 0.0
    %v289 = vmax.f32 %v252, 0.0
    %v290 = vmax.f32 %v255, 0.0
    %v291 = vmax.f32 %v258, 0.0
    %v292 = vld [vmem:[#allocation7] sm:$0xff]
    %v293 = vld [vmem:[#allocation7 + $0x8] sm:$0xff]
    %v294 = vld [vmem:[#allocation7 + $0x10] sm:$0xff]
    %v295 = vld [vmem:[#allocation7 + $0x18] sm:$0xff]
    %v296 = vld [vmem:[#allocation7 + $0x20] sm:$0xff]
    %v297 = vld [vmem:[#allocation7 + $0x28] sm:$0xff]
    %v298 = vld [vmem:[#allocation7 + $0x30] sm:$0xff]
    %v299 = vld [vmem:[#allocation7 + $0x38] sm:$0xff]
    %v300 = vld [vmem:[#allocation7 + $0x40] sm:$0xff]
    %v301 = vld [vmem:[#allocation7 + $0x48] sm:$0xff]
    %v302 = vld [vmem:[#allocation7 + $0x50] sm:$0xff]
    %v303 = vld [vmem:[#allocation7 + $0x58] sm:$0xff]
    %v304 = vld [vmem:[#allocation7 + $0x60] sm:$0xff]
    %v305 = vld [vmem:[#allocation7 + $0x68] sm:$0xff]
    %v306 = vld [vmem:[#allocation7 + $0x70] sm:$0xff]
    %v307 = vld [vmem:[#allocation7 + $0x78] sm:$0xff]
    %v308 = vld [vmem:[#allocation10 + $0x1] sm:$0x1]
    %v309 = vperm.slane %v308, 0
    %310 = vmatpush.msra.mxu0 %v307
    %311 = vmatpush.msra.mxu0 %v306
    %312 = vmatpush.msra.mxu0 %v305
    %313 = vmatpush.msra.mxu0 %v304
    %314 = vmatpush.msra.mxu0 %v303
    %315 = vmatpush.msra.mxu0 %v302
    %316 = vmatpush.msra.mxu0 %v301
    %317 = vmatpush.msra.mxu0 %v300
    %318 = vmatpush.msra.mxu0 %v299
    %319 = vmatpush.msra.mxu0 %v298
    %320 = vmatpush.msra.mxu0 %v297
    %321 = vmatpush.msra.mxu0 %v296
    %322 = vmatpush.msra.mxu0 %v295
    %323 = vmatpush.msra.mxu0 %v294
    %324 = vmatpush.msra.mxu0 %v293
    %325 = vmatpush.msra.mxu0 %v292
    %326 = vmatmul.f32.gmra.mxu0 %v260
    %v327 = vpop.f32.mrf.mxu0
    %v328 = vadd.f32 %v309, %v327
    %329 = vmatmul.f32.gmra.mxu0 %v261
    %v330 = vpop.f32.mrf.mxu0
    %v331 = vadd.f32 %v309, %v330
    %332 = vmatmul.f32.gmra.mxu0 %v262
    %v333 = vpop.f32.mrf.mxu0
    %v334 = vadd.f32 %v309, %v333
    %335 = vmatmul.f32.gmra.mxu0 %v263
    %v336 = vpop.f32.mrf.mxu0
    %v337 = vadd.f32 %v309, %v336
    %338 = vmatmul.f32.gmra.mxu0 %v264
    %v339 = vpop.f32.mrf.mxu0
    %v340 = vadd.f32 %v309, %v339
    %341 = vmatmul.f32.gmra.mxu0 %v265
    %v342 = vpop.f32.mrf.mxu0
    %v343 = vadd.f32 %v309, %v342
    %344 = vmatmul.f32.gmra.mxu0 %v266
    %v345 = vpop.f32.mrf.mxu0
    %v346 = vadd.f32 %v309, %v345
    %347 = vmatmul.f32.gmra.mxu0 %v267
    %v348 = vpop.f32.mrf.mxu0
    %v349 = vadd.f32 %v309, %v348
    %350 = vmatmul.f32.gmra.mxu0 %v268
    %v351 = vpop.f32.mrf.mxu0
    %v352 = vadd.f32 %v309, %v351
    %353 = vmatmul.f32.gmra.mxu0 %v269
    %v354 = vpop.f32.mrf.mxu0
    %v355 = vadd.f32 %v309, %v354
    %356 = vmatmul.f32.gmra.mxu0 %v270
    %v357 = vpop.f32.mrf.mxu0
    %v358 = vadd.f32 %v309, %v357
    %359 = vmatmul.f32.gmra.mxu0 %v271
    %v360 = vpop.f32.mrf.mxu0
    %v361 = vadd.f32 %v309, %v360
    %362 = vmatmul.f32.gmra.mxu0 %v272
    %v363 = vpop.f32.mrf.mxu0
    %v364 = vadd.f32 %v309, %v363
    %365 = vmatmul.f32.gmra.mxu0 %v273
    %v366 = vpop.f32.mrf.mxu0
    %v367 = vadd.f32 %v309, %v366
    %368 = vmatmul.f32.gmra.mxu0 %v274
    %v369 = vpop.f32.mrf.mxu0
    %v370 = vadd.f32 %v309, %v369
    %371 = vmatmul.f32.gmra.mxu0 %v275
    %v372 = vpop.f32.mrf.mxu0
    %v373 = vadd.f32 %v309, %v372
    %374 = vmatmul.f32.gmra.mxu0 %v276
    %v375 = vpop.f32.mrf.mxu0
    %v376 = vadd.f32 %v309, %v375
    %377 = vmatmul.f32.gmra.mxu0 %v277
    %v378 = vpop.f32.mrf.mxu0
    %v379 = vadd.f32 %v309, %v378
    %380 = vmatmul.f32.gmra.mxu0 %v278
    %v381 = vpop.f32.mrf.mxu0
    %v382 = vadd.f32 %v309, %v381
    %383 = vmatmul.f32.gmra.mxu0 %v279
    %v384 = vpop.f32.mrf.mxu0
    %v385 = vadd.f32 %v309, %v384
    %386 = vmatmul.f32.gmra.mxu0 %v280
    %v387 = vpop.f32.mrf.mxu0
    %v388 = vadd.f32 %v309, %v387
    %389 = vmatmul.f32.gmra.mxu0 %v281
    %v390 = vpop.f32.mrf.mxu0
    %v391 = vadd.f32 %v309, %v390
    %392 = vmatmul.f32.gmra.mxu0 %v282
    %v393 = vpop.f32.mrf.mxu0
    %v394 = vadd.f32 %v309, %v393
    %395 = vmatmul.f32.gmra.mxu0 %v283
    %v396 = vpop.f32.mrf.mxu0
    %v397 = vadd.f32 %v309, %v396
    %398 = vmatmul.f32.gmra.mxu0 %v284
    %v399 = vpop.f32.mrf.mxu0
    %v400 = vadd.f32 %v309, %v399
    %401 = vmatmul.f32.gmra.mxu0 %v285
    %v402 = vpop.f32.mrf.mxu0
    %v403 = vadd.f32 %v309, %v402
    %404 = vmatmul.f32.gmra.mxu0 %v286
    %v405 = vpop.f32.mrf.mxu0
    %v406 = vadd.f32 %v309, %v405
    %407 = vmatmul.f32.gmra.mxu0 %v287
    %v408 = vpop.f32.mrf.mxu0
    %v409 = vadd.f32 %v309, %v408
    %410 = vmatmul.f32.gmra.mxu0 %v288
    %v411 = vpop.f32.mrf.mxu0
    %v412 = vadd.f32 %v309, %v411
    %413 = vmatmul.f32.gmra.mxu0 %v289
    %v414 = vpop.f32.mrf.mxu0
    %v415 = vadd.f32 %v309, %v414
    %416 = vmatmul.f32.gmra.mxu0 %v290
    %v417 = vpop.f32.mrf.mxu0
    %v418 = vadd.f32 %v309, %v417
    %419 = vmatmul.f32.gmra.mxu0 %v291
    %v420 = vpop.f32.mrf.mxu0
    %v421 = vadd.f32 %v309, %v420
    %422 = vdwg.mxu0
    %v423 = vmax.f32 %v328, 0.0
    %v424 = vmax.f32 %v331, 0.0
    %v425 = vmax.f32 %v334, 0.0
    %v426 = vmax.f32 %v337, 0.0
    %v427 = vmax.f32 %v340, 0.0
    %v428 = vmax.f32 %v343, 0.0
    %v429 = vmax.f32 %v346, 0.0
    %v430 = vmax.f32 %v349, 0.0
    %v431 = vmax.f32 %v352, 0.0
    %v432 = vmax.f32 %v355, 0.0
    %v433 = vmax.f32 %v358, 0.0
    %v434 = vmax.f32 %v361, 0.0
    %v435 = vmax.f32 %v364, 0.0
    %v436 = vmax.f32 %v367, 0.0
    %v437 = vmax.f32 %v370, 0.0
    %v438 = vmax.f32 %v373, 0.0
    %v439 = vmax.f32 %v376, 0.0
    %v440 = vmax.f32 %v379, 0.0
    %v441 = vmax.f32 %v382, 0.0
    %v442 = vmax.f32 %v385, 0.0
    %v443 = vmax.f32 %v388, 0.0
    %v444 = vmax.f32 %v391, 0.0
    %v445 = vmax.f32 %v394, 0.0
    %v446 = vmax.f32 %v397, 0.0
    %v447 = vmax.f32 %v400, 0.0
    %v448 = vmax.f32 %v403, 0.0
    %v449 = vmax.f32 %v406, 0.0
    %v450 = vmax.f32 %v409, 0.0
    %v451 = vmax.f32 %v412, 0.0
    %v452 = vmax.f32 %v415, 0.0
    %v453 = vmax.f32 %v418, 0.0
    %v454 = vmax.f32 %v421, 0.0
    %s455 = scalar_lea.vmem [#allocation7], 128
    %v456 = vld [vmem:[%s455] sm:$0xff]
    %v457 = vld [vmem:[%s455 + $0x8] sm:$0xff]
    %v458 = vld [vmem:[%s455 + $0x10] sm:$0xff]
    %v459 = vld [vmem:[%s455 + $0x18] sm:$0xff]
    %v460 = vld [vmem:[%s455 + $0x20] sm:$0xff]
    %v461 = vld [vmem:[%s455 + $0x28] sm:$0xff]
    %v462 = vld [vmem:[%s455 + $0x30] sm:$0xff]
    %v463 = vld [vmem:[%s455 + $0x38] sm:$0xff]
    %v464 = vld [vmem:[%s455 + $0x40] sm:$0xff]
    %v465 = vld [vmem:[%s455 + $0x48] sm:$0xff]
    %v466 = vld [vmem:[%s455 + $0x50] sm:$0xff]
    %v467 = vld [vmem:[%s455 + $0x58] sm:$0xff]
    %v468 = vld [vmem:[%s455 + $0x60] sm:$0xff]
    %v469 = vld [vmem:[%s455 + $0x68] sm:$0xff]
    %v470 = vld [vmem:[%s455 + $0x70] sm:$0xff]
    %v471 = vld [vmem:[%s455 + $0x78] sm:$0xff]
    %v472 = vld [vmem:[#allocation10 + $0x2] sm:$0x1]
    %v473 = vperm.slane %v472, 0
    %474 = vmatpush.msra.mxu0 %v471
    %475 = vmatpush.msra.mxu0 %v470
    %476 = vmatpush.msra.mxu0 %v469
    %477 = vmatpush.msra.mxu0 %v468
    %478 = vmatpush.msra.mxu0 %v467
    %479 = vmatpush.msra.mxu0 %v466
    %480 = vmatpush.msra.mxu0 %v465
    %481 = vmatpush.msra.mxu0 %v464
    %482 = vmatpush.msra.mxu0 %v463
    %483 = vmatpush.msra.mxu0 %v462
    %484 = vmatpush.msra.mxu0 %v461
    %485 = vmatpush.msra.mxu0 %v460
    %486 = vmatpush.msra.mxu0 %v459
    %487 = vmatpush.msra.mxu0 %v458
    %488 = vmatpush.msra.mxu0 %v457
    %489 = vmatpush.msra.mxu0 %v456
    %490 = vmatmul.f32.gmra.mxu0 %v423
    %v491 = vpop.f32.mrf.mxu0
    %v492 = vadd.f32 %v473, %v491
    %493 = vmatmul.f32.gmra.mxu0 %v424
    %v494 = vpop.f32.mrf.mxu0
    %v495 = vadd.f32 %v473, %v494
    %496 = vmatmul.f32.gmra.mxu0 %v425
    %v497 = vpop.f32.mrf.mxu0
    %v498 = vadd.f32 %v473, %v497
    %499 = vmatmul.f32.gmra.mxu0 %v426
    %v500 = vpop.f32.mrf.mxu0
    %v501 = vadd.f32 %v473, %v500
    %502 = vmatmul.f32.gmra.mxu0 %v427
    %v503 = vpop.f32.mrf.mxu0
    %v504 = vadd.f32 %v473, %v503
    %505 = vmatmul.f32.gmra.mxu0 %v428
    %v506 = vpop.f32.mrf.mxu0
    %v507 = vadd.f32 %v473, %v506
    %508 = vmatmul.f32.gmra.mxu0 %v429
    %v509 = vpop.f32.mrf.mxu0
    %v510 = vadd.f32 %v473, %v509
    %511 = vmatmul.f32.gmra.mxu0 %v430
    %v512 = vpop.f32.mrf.mxu0
    %v513 = vadd.f32 %v473, %v512
    %514 = vmatmul.f32.gmra.mxu0 %v431
    %v515 = vpop.f32.mrf.mxu0
    %v516 = vadd.f32 %v473, %v515
    %517 = vmatmul.f32.gmra.mxu0 %v432
    %v518 = vpop.f32.mrf.mxu0
    %v519 = vadd.f32 %v473, %v518
    %520 = vmatmul.f32.gmra.mxu0 %v433
    %v521 = vpop.f32.mrf.mxu0
    %v522 = vadd.f32 %v473, %v521
    %523 = vmatmul.f32.gmra.mxu0 %v434
    %v524 = vpop.f32.mrf.mxu0
    %v525 = vadd.f32 %v473, %v524
    %526 = vmatmul.f32.gmra.mxu0 %v435
    %v527 = vpop.f32.mrf.mxu0
    %v528 = vadd.f32 %v473, %v527
    %529 = vmatmul.f32.gmra.mxu0 %v436
    %v530 = vpop.f32.mrf.mxu0
    %v531 = vadd.f32 %v473, %v530
    %532 = vmatmul.f32.gmra.mxu0 %v437
    %v533 = vpop.f32.mrf.mxu0
    %v534 = vadd.f32 %v473, %v533
    %535 = vmatmul.f32.gmra.mxu0 %v438
    %v536 = vpop.f32.mrf.mxu0
    %v537 = vadd.f32 %v473, %v536
    %538 = vmatmul.f32.gmra.mxu0 %v439
    %v539 = vpop.f32.mrf.mxu0
    %v540 = vadd.f32 %v473, %v539
    %541 = vmatmul.f32.gmra.mxu0 %v440
    %v542 = vpop.f32.mrf.mxu0
    %v543 = vadd.f32 %v473, %v542
    %544 = vmatmul.f32.gmra.mxu0 %v441
    %v545 = vpop.f32.mrf.mxu0
    %v546 = vadd.f32 %v473, %v545
    %547 = vmatmul.f32.gmra.mxu0 %v442
    %v548 = vpop.f32.mrf.mxu0
    %v549 = vadd.f32 %v473, %v548
    %550 = vmatmul.f32.gmra.mxu0 %v443
    %v551 = vpop.f32.mrf.mxu0
    %v552 = vadd.f32 %v473, %v551
    %553 = vmatmul.f32.gmra.mxu0 %v444
    %v554 = vpop.f32.mrf.mxu0
    %v555 = vadd.f32 %v473, %v554
    %556 = vmatmul.f32.gmra.mxu0 %v445
    %v557 = vpop.f32.mrf.mxu0
    %v558 = vadd.f32 %v473, %v557
    %559 = vmatmul.f32.gmra.mxu0 %v446
    %v560 = vpop.f32.mrf.mxu0
    %v561 = vadd.f32 %v473, %v560
    %562 = vmatmul.f32.gmra.mxu0 %v447
    %v563 = vpop.f32.mrf.mxu0
    %v564 = vadd.f32 %v473, %v563
    %565 = vmatmul.f32.gmra.mxu0 %v448
    %v566 = vpop.f32.mrf.mxu0
    %v567 = vadd.f32 %v473, %v566
    %568 = vmatmul.f32.gmra.mxu0 %v449
    %v569 = vpop.f32.mrf.mxu0
    %v570 = vadd.f32 %v473, %v569
    %571 = vmatmul.f32.gmra.mxu0 %v450
    %v572 = vpop.f32.mrf.mxu0
    %v573 = vadd.f32 %v473, %v572
    %574 = vmatmul.f32.gmra.mxu0 %v451
    %v575 = vpop.f32.mrf.mxu0
    %v576 = vadd.f32 %v473, %v575
    %577 = vmatmul.f32.gmra.mxu0 %v452
    %v578 = vpop.f32.mrf.mxu0
    %v579 = vadd.f32 %v473, %v578
    %580 = vmatmul.f32.gmra.mxu0 %v453
    %v581 = vpop.f32.mrf.mxu0
    %v582 = vadd.f32 %v473, %v581
    %583 = vmatmul.f32.gmra.mxu0 %v454
    %v584 = vpop.f32.mrf.mxu0
    %v585 = vadd.f32 %v473, %v584
    %586 = vdwg.mxu0
    %v587 = vmax.f32 %v492, 0.0
    %v588 = vmax.f32 %v495, 0.0
    %v589 = vmax.f32 %v498, 0.0
    %v590 = vmax.f32 %v501, 0.0
    %v591 = vmax.f32 %v504, 0.0
    %v592 = vmax.f32 %v507, 0.0
    %v593 = vmax.f32 %v510, 0.0
    %v594 = vmax.f32 %v513, 0.0
    %v595 = vmax.f32 %v516, 0.0
    %v596 = vmax.f32 %v519, 0.0
    %v597 = vmax.f32 %v522, 0.0
    %v598 = vmax.f32 %v525, 0.0
    %v599 = vmax.f32 %v528, 0.0
    %v600 = vmax.f32 %v531, 0.0
    %v601 = vmax.f32 %v534, 0.0
    %v602 = vmax.f32 %v537, 0.0
    %v603 = vmax.f32 %v540, 0.0
    %v604 = vmax.f32 %v543, 0.0
    %v605 = vmax.f32 %v546, 0.0
    %v606 = vmax.f32 %v549, 0.0
    %v607 = vmax.f32 %v552, 0.0
    %v608 = vmax.f32 %v555, 0.0
    %v609 = vmax.f32 %v558, 0.0
    %v610 = vmax.f32 %v561, 0.0
    %v611 = vmax.f32 %v564, 0.0
    %v612 = vmax.f32 %v567, 0.0
    %v613 = vmax.f32 %v570, 0.0
    %v614 = vmax.f32 %v573, 0.0
    %v615 = vmax.f32 %v576, 0.0
    %v616 = vmax.f32 %v579, 0.0
    %v617 = vmax.f32 %v582, 0.0
    %v618 = vmax.f32 %v585, 0.0
    %v619 = vld [vmem:[#allocation8] sm:$0xff]
    %v620 = vld [vmem:[#allocation8 + $0x8] sm:$0xff]
    %v621 = vld [vmem:[#allocation8 + $0x10] sm:$0xff]
    %v622 = vld [vmem:[#allocation8 + $0x18] sm:$0xff]
    %v623 = vld [vmem:[#allocation8 + $0x20] sm:$0xff]
    %v624 = vld [vmem:[#allocation8 + $0x28] sm:$0xff]
    %v625 = vld [vmem:[#allocation8 + $0x30] sm:$0xff]
    %v626 = vld [vmem:[#allocation8 + $0x38] sm:$0xff]
    %v627 = vld [vmem:[#allocation8 + $0x40] sm:$0xff]
    %v628 = vld [vmem:[#allocation8 + $0x48] sm:$0xff]
    %v629 = vld [vmem:[#allocation8 + $0x50] sm:$0xff]
    %v630 = vld [vmem:[#allocation8 + $0x58] sm:$0xff]
    %v631 = vld [vmem:[#allocation8 + $0x60] sm:$0xff]
    %v632 = vld [vmem:[#allocation8 + $0x68] sm:$0xff]
    %v633 = vld [vmem:[#allocation8 + $0x70] sm:$0xff]
    %v634 = vld [vmem:[#allocation8 + $0x78] sm:$0xff]
    %v635 = vld [vmem:[#allocation10 + $0x3] sm:$0x1]
    %v636 = vperm.slane %v635, 0
    %637 = vmatpush.msra.mxu0 %v634
    %638 = vmatpush.msra.mxu0 %v633
    %639 = vmatpush.msra.mxu0 %v632
    %640 = vmatpush.msra.mxu0 %v631
    %641 = vmatpush.msra.mxu0 %v630
    %642 = vmatpush.msra.mxu0 %v629
    %643 = vmatpush.msra.mxu0 %v628
    %644 = vmatpush.msra.mxu0 %v627
    %645 = vmatpush.msra.mxu0 %v626
    %646 = vmatpush.msra.mxu0 %v625
    %647 = vmatpush.msra.mxu0 %v624
    %648 = vmatpush.msra.mxu0 %v623
    %649 = vmatpush.msra.mxu0 %v622
    %650 = vmatpush.msra.mxu0 %v621
    %651 = vmatpush.msra.mxu0 %v620
    %652 = vmatpush.msra.mxu0 %v619
    %653 = vmatmul.f32.gmra.mxu0 %v587
    %v654 = vpop.f32.mrf.mxu0
    %v655 = vadd.f32 %v636, %v654
    %656 = vmatmul.f32.gmra.mxu0 %v588
    %v657 = vpop.f32.mrf.mxu0
    %v658 = vadd.f32 %v636, %v657
    %659 = vmatmul.f32.gmra.mxu0 %v589
    %v660 = vpop.f32.mrf.mxu0
    %v661 = vadd.f32 %v636, %v660
    %662 = vmatmul.f32.gmra.mxu0 %v590
    %v663 = vpop.f32.mrf.mxu0
    %v664 = vadd.f32 %v636, %v663
    %665 = vmatmul.f32.gmra.mxu0 %v591
    %v666 = vpop.f32.mrf.mxu0
    %v667 = vadd.f32 %v636, %v666
    %668 = vmatmul.f32.gmra.mxu0 %v592
    %v669 = vpop.f32.mrf.mxu0
    %v670 = vadd.f32 %v636, %v669
    %671 = vmatmul.f32.gmra.mxu0 %v593
    %v672 = vpop.f32.mrf.mxu0
    %v673 = vadd.f32 %v636, %v672
    %674 = vmatmul.f32.gmra.mxu0 %v594
    %v675 = vpop.f32.mrf.mxu0
    %v676 = vadd.f32 %v636, %v675
    %677 = vmatmul.f32.gmra.mxu0 %v595
    %v678 = vpop.f32.mrf.mxu0
    %v679 = vadd.f32 %v636, %v678
    %680 = vmatmul.f32.gmra.mxu0 %v596
    %v681 = vpop.f32.mrf.mxu0
    %v682 = vadd.f32 %v636, %v681
    %683 = vmatmul.f32.gmra.mxu0 %v597
    %v684 = vpop.f32.mrf.mxu0
    %v685 = vadd.f32 %v636, %v684
    %686 = vmatmul.f32.gmra.mxu0 %v598
    %v687 = vpop.f32.mrf.mxu0
    %v688 = vadd.f32 %v636, %v687
    %689 = vmatmul.f32.gmra.mxu0 %v599
    %v690 = vpop.f32.mrf.mxu0
    %v691 = vadd.f32 %v636, %v690
    %692 = vmatmul.f32.gmra.mxu0 %v600
    %v693 = vpop.f32.mrf.mxu0
    %v694 = vadd.f32 %v636, %v693
    %695 = vmatmul.f32.gmra.mxu0 %v601
    %v696 = vpop.f32.mrf.mxu0
    %v697 = vadd.f32 %v636, %v696
    %698 = vmatmul.f32.gmra.mxu0 %v602
    %v699 = vpop.f32.mrf.mxu0
    %v700 = vadd.f32 %v636, %v699
    %701 = vmatmul.f32.gmra.mxu0 %v603
    %v702 = vpop.f32.mrf.mxu0
    %v703 = vadd.f32 %v636, %v702
    %704 = vmatmul.f32.gmra.mxu0 %v604
    %v705 = vpop.f32.mrf.mxu0
    %v706 = vadd.f32 %v636, %v705
    %707 = vmatmul.f32.gmra.mxu0 %v605
    %v708 = vpop.f32.mrf.mxu0
    %v709 = vadd.f32 %v636, %v708
    %710 = vmatmul.f32.gmra.mxu0 %v606
    %v711 = vpop.f32.mrf.mxu0
    %v712 = vadd.f32 %v636, %v711
    %713 = vmatmul.f32.gmra.mxu0 %v607
    %v714 = vpop.f32.mrf.mxu0
    %v715 = vadd.f32 %v636, %v714
    %716 = vmatmul.f32.gmra.mxu0 %v608
    %v717 = vpop.f32.mrf.mxu0
    %v718 = vadd.f32 %v636, %v717
    %719 = vmatmul.f32.gmra.mxu0 %v609
    %v720 = vpop.f32.mrf.mxu0
    %v721 = vadd.f32 %v636, %v720
    %722 = vmatmul.f32.gmra.mxu0 %v610
    %v723 = vpop.f32.mrf.mxu0
    %v724 = vadd.f32 %v636, %v723
    %725 = vmatmul.f32.gmra.mxu0 %v611
    %v726 = vpop.f32.mrf.mxu0
    %v727 = vadd.f32 %v636, %v726
    %728 = vmatmul.f32.gmra.mxu0 %v612
    %v729 = vpop.f32.mrf.mxu0
    %v730 = vadd.f32 %v636, %v729
    %731 = vmatmul.f32.gmra.mxu0 %v613
    %v732 = vpop.f32.mrf.mxu0
    %v733 = vadd.f32 %v636, %v732
    %734 = vmatmul.f32.gmra.mxu0 %v614
    %v735 = vpop.f32.mrf.mxu0
    %v736 = vadd.f32 %v636, %v735
    %737 = vmatmul.f32.gmra.mxu0 %v615
    %v738 = vpop.f32.mrf.mxu0
    %v739 = vadd.f32 %v636, %v738
    %740 = vmatmul.f32.gmra.mxu0 %v616
    %v741 = vpop.f32.mrf.mxu0
    %v742 = vadd.f32 %v636, %v741
    %743 = vmatmul.f32.gmra.mxu0 %v617
    %v744 = vpop.f32.mrf.mxu0
    %v745 = vadd.f32 %v636, %v744
    %746 = vmatmul.f32.gmra.mxu0 %v618
    %v747 = vpop.f32.mrf.mxu0
    %v748 = vadd.f32 %v636, %v747
    %749 = vdwg.mxu0
    %750 = vst [vmem:[#allocation11] sm:$0xff] %v655
    %751 = vst [vmem:[#allocation11 + $0x8] sm:$0xff] %v658
    %752 = vst [vmem:[#allocation11 + $0x10] sm:$0xff] %v661
    %753 = vst [vmem:[#allocation11 + $0x18] sm:$0xff] %v664
    %754 = vst [vmem:[#allocation11 + $0x20] sm:$0xff] %v667
    %755 = vst [vmem:[#allocation11 + $0x28] sm:$0xff] %v670
    %756 = vst [vmem:[#allocation11 + $0x30] sm:$0xff] %v673
    %757 = vst [vmem:[#allocation11 + $0x38] sm:$0xff] %v676
    %758 = vst [vmem:[#allocation11 + $0x40] sm:$0xff] %v679
    %759 = vst [vmem:[#allocation11 + $0x48] sm:$0xff] %v682
    %760 = vst [vmem:[#allocation11 + $0x50] sm:$0xff] %v685
    %761 = vst [vmem:[#allocation11 + $0x58] sm:$0xff] %v688
    %762 = vst [vmem:[#allocation11 + $0x60] sm:$0xff] %v691
    %763 = vst [vmem:[#allocation11 + $0x68] sm:$0xff] %v694
    %764 = vst [vmem:[#allocation11 + $0x70] sm:$0xff] %v697
    %765 = vst [vmem:[#allocation11 + $0x78] sm:$0xff] %v700
    %766 = vst [vmem:[#allocation11 + $0x80] sm:$0xff] %v703
    %767 = vst [vmem:[#allocation11 + $0x88] sm:$0xff] %v706
    %768 = vst [vmem:[#allocation11 + $0x90] sm:$0xff] %v709
    %769 = vst [vmem:[#allocation11 + $0x98] sm:$0xff] %v712
    %770 = vst [vmem:[#allocation11 + $0xa0] sm:$0xff] %v715
    %771 = vst [vmem:[#allocation11 + $0xa8] sm:$0xff] %v718
    %772 = vst [vmem:[#allocation11 + $0xb0] sm:$0xff] %v721
    %773 = vst [vmem:[#allocation11 + $0xb8] sm:$0xff] %v724
    %774 = vst [vmem:[#allocation11 + $0xc0] sm:$0xff] %v727
    %775 = vst [vmem:[#allocation11 + $0xc8] sm:$0xff] %v730
    %776 = vst [vmem:[#allocation11 + $0xd0] sm:$0xff] %v733
    %777 = vst [vmem:[#allocation11 + $0xd8] sm:$0xff] %v736
    %778 = vst [vmem:[#allocation11 + $0xe0] sm:$0xff] %v739
    %779 = vst [vmem:[#allocation11 + $0xe8] sm:$0xff] %v742
    %780 = vst [vmem:[#allocation11 + $0xf0] sm:$0xff] %v745
    %781 = vst [vmem:[#allocation11 + $0xf8] sm:$0xff] %v748
    // Predicated region
    $region42: #{tpu_custom_call.1} parent=1 // pred_check
      _
    $region43: #{tpu_custom_call.1} parent=1 // pred_check_branch
      %783 = sbr.rel (0) target = $region45
    $region44: #{tpu_custom_call.1} parent=1 // pred_region
      %785 = vsyncadd [#allocation4], 0
      %s786 = sshll.u32 [#allocation11], 4
      %s787 = int_to_ptr.vmem [resolvable:$true] %s786
      %s788 = sshll.u32 %s5, 4
      %s789 = int_to_ptr.hbm [resolvable:$true] %s788
      %794 = dma.vmem_to_hbm [thread:$0]  %s787, 4096, %s789, [#allocation4], 128, 128, 8
    $region45: #{tpu_custom_call.1} parent=1 // pred_fallthru
      _
    // Predicated region
    $region46: #{tpu_custom_call.1} parent=1 // pred_check
      _
    $region47: #{tpu_custom_call.1} parent=1 // pred_check_branch
      %796 = sbr.rel (0) target = $region49
    $region48: #{tpu_custom_call.1} parent=1 // pred_region
      %798 = dma.done [#allocation4], 4096
    $region49: #{tpu_custom_call.1} parent=1 // pred_fallthru
      _
    %799 = vsyncpa [#allocation3], 1
    %800 = vsyncpa [#allocation6], 1
    %801 = vsyncpa [#allocation9], 1
    %802 = vsyncpa [#allocation4], 1

</llo_original>
